<compile_context>
chip_gen: v5e
topology: v5e:2x2
jax: 0.10.0
libtpu: 0.0.40
codegen_flags: <defaults>
</compile_context>

<pallas_src>
import functools

import jax
import jax.numpy as jnp
from jax import lax
from jax.experimental import pallas as pl
from jax.experimental.pallas import tpu as pltpu


def _tem_kernel_fast(b0f_row_ref, w1s_ref, b1_ref, masks_ref, o_ref, *, C):
    """Default path: y == 0, so conv1's input is spatially constant.

    b0f_row_ref : (1, C_in)        f32   BN-folded conv0 bias (row layout).
    w1s_ref     : (9*C_out, C_in)  bf16  conv1 weights, tap-major rows (t = ky*3 + kx).
    b1_ref      : (C_out, 1)       f32
    masks_ref   : (9, N)           f32   zero-padding boundary masks, p = b*H*W + h*W + w.
    o_ref       : (C_out, N)       f32
    """
    n = o_ref.shape[1]
    # z = relu(bn(conv0(0))): one value per channel.  bf16 round-trip so the fast path uses
    # exactly the same activation values as the general path's bf16 MXU operands.
    v_row = jnp.maximum(b0f_row_ref[...], 0.0).astype(jnp.bfloat16)          # (1, C_in)
    # Review item 1: one tiny matvec  u[t*C + co] = sum_ci w1[co, ci, tap t] * v[ci].
    # At 288x32x1 the MXU offers nothing, so it is a broadcast multiply + lane reduction
    # (VPU + XLU) with exact f32 products and f32 accumulation (bf16-dot semantics).
    u = jnp.sum(w1s_ref[...].astype(jnp.float32) * v_row.astype(jnp.float32),
                axis=1, keepdims=True)                                        # (9*C_out, 1)
    # Compose out[c, p] = b1[c] + sum_t masks[t, p] * u[t*C + c] with broadcast VPU adds.
    # Centre tap (t == 4) is always in-bounds -> folded into the initial broadcast.
    acc = jnp.broadcast_to(b1_ref[...] + u[4 * C:5 * C, :], (C, n))
    for t in range(9):
        if t == 4:
            continue
        acc = acc + u[t * C:(t + 1) * C, :] * masks_ref[t:t + 1, :]
    o_ref[...] = acc


def _tem_kernel_general(x_ref, w0f_ref, b0f_ref, w1f_ref, b1_ref, masks_ref,
                        o_ref, tap_ref, *, C, W):
    """Cross-check-only, input-dependent path (never used on the perf path; item 10).

    x_ref    : (C_in, N)         f32   lane-dense activations, p = b*H*W + h*W + w.
    w0f_ref  : (C_out, C_in)     bf16  BN-folded conv0 weight.
    b0f_ref  : (C_out, 1)        f32   BN-folded conv0 bias.
    w1f_ref  : (C_out, 9*C_in)   bf16  conv1 weight as one lane-dense im2col slab.
    b1_ref   : (C_out, 1)        f32
    masks_ref: (9, N)            f32   zero-padding boundary masks.
    tap_ref  : (9*C_in, N)       bf16  VMEM scratch: im2col tapped activations.
    """
    n = o_ref.shape[1]
    # adaptive_avg_pool2d to the input size + nearest upsample are identities -> y == 0.
    x = x_ref[...]
    y = (x - x).astype(jnp.bfloat16)                                          # exactly zero
    z = jnp.dot(w0f_ref[...], y, preferred_element_type=jnp.float32) + b0f_ref[...]
    z = jnp.maximum(z, 0.0)                                                   # (C_in, N) f32
    # Build the (9*C_in, N) im2col slab: one lane roll + boundary mask per tap.
    # Rolls / masking stay in f32 (item 6); cast to bf16 once per tap at the store (item 5).
    for ky in range(3):
        dy = ky - 1
        for kx in range(3):
            dx = kx - 1
            t = ky * 3 + kx
            k = dy * W + dx                               # flat offset of the source pixel
            # tap[p] = z[p + k]   (pltpu.roll == jnp.roll: out[i] = in[(i - s) % n])
            tap = z if k == 0 else pltpu.roll(z, (-k) % n, 1)
            # Host-precomputed mask (item 3) zeroes out-of-image taps and kills any
            # cross-image / end-of-array wraparound introduced by the roll.
            tap = tap * masks_ref[t:t + 1, :]
            tap_ref[t * C:(t + 1) * C, :] = tap.astype(jnp.bfloat16)
    # Review item 2: a single fused K = 9*C_in MXU contraction instead of nine K=C_in dots.
    o_ref[...] = (jnp.dot(w1f_ref[...], tap_ref[...],
                          preferred_element_type=jnp.float32) + b1_ref[...])


def _boundary_masks(B, H, W):
    """Host-side (9, B*H*W) f32 zero-padding masks for a 3x3 / pad=1 conv, tap-major."""
    hh = jnp.arange(H)
    ww = jnp.arange(W)
    rows = []
    for ky in range(3):
        dy = ky - 1
        for kx in range(3):
            dx = kx - 1
            mh = (hh + dy >= 0) & (hh + dy < H)                       # (H,)
            mw = (ww + dx >= 0) & (ww + dx < W)                       # (W,)
            m = (mh[:, None] & mw[None, :]).astype(jnp.float32)       # (H, W)
            rows.append(jnp.tile(m.reshape(-1), B))                   # (B*H*W,)
    return jnp.stack(rows)                                            # (9, B*H*W)


def texture_enhancement_module(x_nchw, params, *, exploit_identity_pool=True):
    """Pallas TPU forward of TextureEnhancementModule.  x_nchw: (B, C, H, W) float32."""
    B, C, H, W = x_nchw.shape
    w0, b0, gamma, beta, rmean, rvar, w1, b1 = params
    n = B * H * W
    eps = 1e-5

    # Guard (correctness review): the identity shortcut is only valid because the module
    # always pools to the *input* spatial size: F.adaptive_avg_pool2d(x, (H, W)).
    pool_size = (H, W)
    if pool_size != (x_nchw.shape[2], x_nchw.shape[3]):
        raise NotImplementedError(
            "identity-pool shortcut requires pool output size == input size")

    # Fold BatchNorm (inference running stats) into conv0's weight and bias on the host.
    s = gamma * lax.rsqrt(rvar + eps)                                  # (C,)
    w0f = (s[:, None] * w0[:, :, 0, 0]).astype(jnp.bfloat16)           # (C_out, C_in) bf16
    b0f = s * (b0 - rmean) + beta                                      # (C,) f32
    b1c = b1.reshape(C, 1)
    masks = _boundary_masks(B, H, W)                                   # (9, N) f32

    vmem = pl.BlockSpec(memory_space=pltpu.MemorySpace.VMEM)
    out_shape = jax.ShapeDtypeStruct((C, n), jnp.float32)

    if exploit_identity_pool:
        # conv1 weights tap-major, (9*C_out, C_in), for the tiny matvec (items 1, 7).
        w1s = jnp.transpose(w1, (2, 3, 0, 1)).reshape(9 * C, C).astype(jnp.bfloat16)
        out_flat = pl.pallas_call(
            functools.partial(_tem_kernel_fast, C=C),
            out_shape=out_shape,
            in_specs=[vmem] * 4,
            out_specs=vmem,
        )(b0f.reshape(1, C), w1s, b1c, masks)
    else:
        # Cross-check-only general path.  conv1 weight as one lane-dense (C_out, 9*C_in)
        # slab feeding a single fused im2col dot (items 2, 7).
        w1f = jnp.transpose(w1, (0, 2, 3, 1)).reshape(C, 9 * C).astype(jnp.bfloat16)
        # Lane-dense activation slab: (C, B*H*W); minor dim is a multiple of 128.
        x_flat = jnp.transpose(x_nchw, (1, 0, 2, 3)).reshape(C, n)
        out_flat = pl.pallas_call(
            functools.partial(_tem_kernel_general, C=C, W=W),
            out_shape=out_shape,
            in_specs=[vmem] * 6,
            out_specs=vmem,
            scratch_shapes=[pltpu.VMEM((9 * C, n), jnp.bfloat16)],
        )(x_flat, w0f, b0f.reshape(C, 1), w1f, b1c, masks)

    # Item 11 (lowest priority): accept the small host-side transpose back to NCHW.
    return jnp.transpose(out_flat.reshape(C, B, H, W), (1, 0, 2, 3))


def _reference_forward(x, params):
    """Pure-JAX f32 reference of the PyTorch forward (NCHW)."""
    w0, b0, gamma, beta, rmean, rvar, w1, b1 = params
    eps = 1e-5
    y = x - x                                   # identity pool + identity nearest upsample
    z0 = lax.conv_general_dilated(
        y, w0, (1, 1), 'VALID',
        dimension_numbers=('NCHW', 'OIHW', 'NCHW')) + b0.reshape(1, -1, 1, 1)
    s = gamma * lax.rsqrt(rvar + eps)
    z = (z0 - rmean.reshape(1, -1, 1, 1)) * s.reshape(1, -1, 1, 1) + beta.reshape(1, -1, 1, 1)
    z = jnp.maximum(z, 0.0)
    out = lax.conv_general_dilated(
        z, w1, (1, 1), ((1, 1), (1, 1)),
        dimension_numbers=('NCHW', 'OIHW', 'NCHW')) + b1.reshape(1, -1, 1, 1)
    return out


if __name__ == "__main__":
    B, C, H, W = 2, 32, 16, 16

    key = jax.random.PRNGKey(0)
    ks = jax.random.split(key, 8)

    # Input in PyTorch's NCHW layout.
    x = jax.random.normal(ks[0], (B, C, H, W), jnp.float32)

    # Parameters in PyTorch-native layouts.
    w0 = 0.10 * jax.random.normal(ks[1], (C, C, 1, 1), jnp.float32)
    b0 = 0.10 * jax.random.normal(ks[2], (C,), jnp.float32)
    gamma = 1.0 + 0.10 * jax.random.normal(ks[3], (C,), jnp.float32)
    beta = 0.10 * jax.random.normal(ks[4], (C,), jnp.float32)
    rmean = 0.10 * jax.random.normal(ks[5], (C,), jnp.float32)
    rvar = 1.0 + 0.5 * jax.nn.sigmoid(jax.random.normal(ks[6], (C,), jnp.float32))
    w1 = 0.05 * jax.random.normal(ks[7], (C, C, 3, 3), jnp.float32)
    b1 = jnp.linspace(-0.1, 0.1, C, dtype=jnp.float32)
    params = (w0, b0, gamma, beta, rmean, rvar, w1, b1)

    out = jax.block_until_ready(texture_enhancement_module(x, params))
    out_general = jax.block_until_ready(
        texture_enhancement_module(x, params, exploit_identity_pool=False))
    ref = jax.block_until_ready(_reference_forward(x, params))

    assert out.shape == (B, C, H, W) and out.dtype == jnp.float32
    # Fast (identity-exploiting) and general (fused im2col) kernels must agree.
    assert jnp.allclose(out, out_general, atol=1e-3), "fast vs general path mismatch"
    # bf16 operands vs f32 reference: ~1e-3 expected deviation.
    assert jnp.allclose(out, ref, atol=1e-2, rtol=1e-2), "kernel vs reference mismatch"
    print("KERNEL_OK")
</pallas_src>

<mosaic_0001>
module attributes {stable_mosaic.version = 11 : i64} {
  func.func @_tem_kernel_fast(%arg0: memref<1x32xf32, #tpu.memory_space<vmem>>, %arg1: memref<288x32xbf16, #tpu.memory_space<vmem>>, %arg2: memref<32x1xf32, #tpu.memory_space<vmem>>, %arg3: memref<9x512xf32, #tpu.memory_space<vmem>>, %arg4: memref<32x512xf32, #tpu.memory_space<vmem>>) attributes {dimension_semantics = [], scalar_prefetch = 0 : i64, scratch_operands = 0 : i64, tpu.core_type = #tpu.core_type<tc>} {
    %c0 = arith.constant 0 : index
    %c0_0 = arith.constant 0 : index
    %0 = vector.load %arg0[%c0, %c0_0] : memref<1x32xf32, #tpu.memory_space<vmem>>, vector<1x32xf32>
    %cst = arith.constant 0.000000e+00 : f32
    %1 = vector.broadcast %cst : f32 to vector<1x32xf32>
    %2 = arith.maximumf %0, %1 : vector<1x32xf32>
    %3 = arith.truncf %2 : vector<1x32xf32> to vector<1x32xbf16>
    %c0_1 = arith.constant 0 : index
    %c0_2 = arith.constant 0 : index
    %4 = vector.load %arg1[%c0_1, %c0_2] : memref<288x32xbf16, #tpu.memory_space<vmem>>, vector<288x32xbf16>
    %5 = arith.extf %4 : vector<288x32xbf16> to vector<288x32xf32>
    %6 = arith.extf %3 : vector<1x32xbf16> to vector<1x32xf32>
    %7 = vector.broadcast %6 : vector<1x32xf32> to vector<288x32xf32>
    %8 = arith.mulf %5, %7 : vector<288x32xf32>
    %cst_3 = arith.constant dense<0.000000e+00> : vector<288xf32>
    %9 = vector.multi_reduction <add>, %8, %cst_3 [1] : vector<288x32xf32> to vector<288xf32>
    %10 = vector.shape_cast %9 : vector<288xf32> to vector<288x1xf32>
    %c0_4 = arith.constant 0 : index
    %c0_5 = arith.constant 0 : index
    %11 = vector.load %arg2[%c0_4, %c0_5] : memref<32x1xf32, #tpu.memory_space<vmem>>, vector<32x1xf32>
    %12 = vector.extract_strided_slice %10 {offsets = [128, 0], sizes = [32, 1], strides = [1, 1]} : vector<288x1xf32> to vector<32x1xf32>
    %13 = arith.addf %11, %12 : vector<32x1xf32>
    %14 = vector.shape_cast %13 : vector<32x1xf32> to vector<32x1xf32>
    %15 = vector.broadcast %14 : vector<32x1xf32> to vector<32x512xf32>
    %16 = vector.extract_strided_slice %10 {offsets = [0, 0], sizes = [32, 1], strides = [1, 1]} : vector<288x1xf32> to vector<32x1xf32>
    %c0_6 = arith.constant 0 : index
    %c0_7 = arith.constant 0 : index
    %17 = vector.load %arg3[%c0_6, %c0_7] : memref<9x512xf32, #tpu.memory_space<vmem>>, vector<1x512xf32>
    %18 = vector.broadcast %16 : vector<32x1xf32> to vector<32x512xf32>
    %19 = vector.broadcast %17 : vector<1x512xf32> to vector<32x512xf32>
    %20 = arith.mulf %18, %19 : vector<32x512xf32>
    %21 = arith.addf %15, %20 : vector<32x512xf32>
    %22 = vector.extract_strided_slice %10 {offsets = [32, 0], sizes = [32, 1], strides = [1, 1]} : vector<288x1xf32> to vector<32x1xf32>
    %c1 = arith.constant 1 : index
    %c0_8 = arith.constant 0 : index
    %23 = vector.load %arg3[%c1, %c0_8] : memref<9x512xf32, #tpu.memory_space<vmem>>, vector<1x512xf32>
    %24 = vector.broadcast %22 : vector<32x1xf32> to vector<32x512xf32>
    %25 = vector.broadcast %23 : vector<1x512xf32> to vector<32x512xf32>
    %26 = arith.mulf %24, %25 : vector<32x512xf32>
    %27 = arith.addf %21, %26 : vector<32x512xf32>
    %28 = vector.extract_strided_slice %10 {offsets = [64, 0], sizes = [32, 1], strides = [1, 1]} : vector<288x1xf32> to vector<32x1xf32>
    %c2 = arith.constant 2 : index
    %c0_9 = arith.constant 0 : index
    %29 = vector.load %arg3[%c2, %c0_9] : memref<9x512xf32, #tpu.memory_space<vmem>>, vector<1x512xf32>
    %30 = vector.broadcast %28 : vector<32x1xf32> to vector<32x512xf32>
    %31 = vector.broadcast %29 : vector<1x512xf32> to vector<32x512xf32>
    %32 = arith.mulf %30, %31 : vector<32x512xf32>
    %33 = arith.addf %27, %32 : vector<32x512xf32>
    %34 = vector.extract_strided_slice %10 {offsets = [96, 0], sizes = [32, 1], strides = [1, 1]} : vector<288x1xf32> to vector<32x1xf32>
    %c3 = arith.constant 3 : index
    %c0_10 = arith.constant 0 : index
    %35 = vector.load %arg3[%c3, %c0_10] : memref<9x512xf32, #tpu.memory_space<vmem>>, vector<1x512xf32>
    %36 = vector.broadcast %34 : vector<32x1xf32> to vector<32x512xf32>
    %37 = vector.broadcast %35 : vector<1x512xf32> to vector<32x512xf32>
    %38 = arith.mulf %36, %37 : vector<32x512xf32>
    %39 = arith.addf %33, %38 : vector<32x512xf32>
    %40 = vector.extract_strided_slice %10 {offsets = [160, 0], sizes = [32, 1], strides = [1, 1]} : vector<288x1xf32> to vector<32x1xf32>
    %c5 = arith.constant 5 : index
    %c0_11 = arith.constant 0 : index
    %41 = vector.load %arg3[%c5, %c0_11] : memref<9x512xf32, #tpu.memory_space<vmem>>, vector<1x512xf32>
    %42 = vector.broadcast %40 : vector<32x1xf32> to vector<32x512xf32>
    %43 = vector.broadcast %41 : vector<1x512xf32> to vector<32x512xf32>
    %44 = arith.mulf %42, %43 : vector<32x512xf32>
    %45 = arith.addf %39, %44 : vector<32x512xf32>
    %46 = vector.extract_strided_slice %10 {offsets = [192, 0], sizes = [32, 1], strides = [1, 1]} : vector<288x1xf32> to vector<32x1xf32>
    %c6 = arith.constant 6 : index
    %c0_12 = arith.constant 0 : index
    %47 = vector.load %arg3[%c6, %c0_12] : memref<9x512xf32, #tpu.memory_space<vmem>>, vector<1x512xf32>
    %48 = vector.broadcast %46 : vector<32x1xf32> to vector<32x512xf32>
    %49 = vector.broadcast %47 : vector<1x512xf32> to vector<32x512xf32>
    %50 = arith.mulf %48, %49 : vector<32x512xf32>
    %51 = arith.addf %45, %50 : vector<32x512xf32>
    %52 = vector.extract_strided_slice %10 {offsets = [224, 0], sizes = [32, 1], strides = [1, 1]} : vector<288x1xf32> to vector<32x1xf32>
    %c7 = arith.constant 7 : index
    %c0_13 = arith.constant 0 : index
    %53 = vector.load %arg3[%c7, %c0_13] : memref<9x512xf32, #tpu.memory_space<vmem>>, vector<1x512xf32>
    %54 = vector.broadcast %52 : vector<32x1xf32> to vector<32x512xf32>
    %55 = vector.broadcast %53 : vector<1x512xf32> to vector<32x512xf32>
    %56 = arith.mulf %54, %55 : vector<32x512xf32>
    %57 = arith.addf %51, %56 : vector<32x512xf32>
    %58 = vector.extract_strided_slice %10 {offsets = [256, 0], sizes = [32, 1], strides = [1, 1]} : vector<288x1xf32> to vector<32x1xf32>
    %c8 = arith.constant 8 : index
    %c0_14 = arith.constant 0 : index
    %59 = vector.load %arg3[%c8, %c0_14] : memref<9x512xf32, #tpu.memory_space<vmem>>, vector<1x512xf32>
    %60 = vector.broadcast %58 : vector<32x1xf32> to vector<32x512xf32>
    %61 = vector.broadcast %59 : vector<1x512xf32> to vector<32x512xf32>
    %62 = arith.mulf %60, %61 : vector<32x512xf32>
    %63 = arith.addf %57, %62 : vector<32x512xf32>
    %c0_15 = arith.constant 0 : index
    %c0_16 = arith.constant 0 : index
    %64 = vector.load %arg4[%c0_15, %c0_16] : memref<32x512xf32, #tpu.memory_space<vmem>>, vector<32x512xf32>
    tpu.vector_store %arg4[%c0_15, %c0_16], %63 {strides = array<i32>} : memref<32x512xf32, #tpu.memory_space<vmem>>, vector<32x512xf32>,
    return
  }
}

</mosaic_0001>

<llo_original>
// kernel: tpu_custom_call.1
$region0: #{tpu_custom_call.1}
  #allocation0 [shape = 'u32[]', space=smem, size = 0x4, offset = 0x4, fixed_abs, tag = 'smem constant byte address 0x4 - core index']
  #allocation1 [shape = 'u32[72,128]{1,0:T(1,128)}', space=vmem, size = 0x9000, scoped, tag = 'internal scratch']
  %s0 = inlined_call_operand.vmem [shape: f32[1,32], index: 0, kind: input, shape index: {}]
  %s1 = inlined_call_operand.vmem [shape: bf16[288,32], index: 1, kind: input, shape index: {}]
  %s2 = inlined_call_operand.vmem [shape: f32[32,1], index: 2, kind: input, shape index: {}]
  %s3 = inlined_call_operand.vmem [shape: f32[9,512], index: 3, kind: input, shape index: {}]
  %s4 = inlined_call_operand.hbm [shape: f32[32,512], index: 4, kind: output, shape index: {}]
  %s5 = sld [smem:[#allocation0]]
  $region26: #{tpu_custom_call.1} parent=0
    _
  %s7 = ssub.s32 1, %s5
  %s8 = scalar_select 0, %s7, %s5
  $region1: #{tpu_custom_call.1} parent=0
    #allocation2 [shape = 'u8[65536]{0}', space=vmem, size = 0x10000, scoped, tag = 'output window, operand 0, single buffered']
    #allocation3 [shape = 's32[1]{0}', space=sflag, size = 0x4, scoped, tag = 'scoped memory for tpu_custom_call.1']
    %9 = vsyncpa [#allocation3], 0
    // Predicated region
    $region2: #{tpu_custom_call.1} parent=1 // pred_check
      _
    $region3: #{tpu_custom_call.1} parent=1 // pred_check_branch
      %11 = sbr.rel (0) target = $region5
    $region4: #{tpu_custom_call.1} parent=1 // pred_region
      _
    $region5: #{tpu_custom_call.1} parent=1 // pred_fallthru
      _
    // Predicated region
    $region6: #{tpu_custom_call.1} parent=1 // pred_check
      _
    $region7: #{tpu_custom_call.1} parent=1 // pred_check_branch
      %13 = sbr.rel (0) target = $region9
    $region8: #{tpu_custom_call.1} parent=1 // pred_region
      _
    $region9: #{tpu_custom_call.1} parent=1 // pred_fallthru
      _
    // Predicated region
    $region10: #{tpu_custom_call.1} parent=1 // pred_check
      _
    $region11: #{tpu_custom_call.1} parent=1 // pred_check_branch
      %15 = sbr.rel (0) target = $region13
    $region12: #{tpu_custom_call.1} parent=1 // pred_region
      _
    $region13: #{tpu_custom_call.1} parent=1 // pred_fallthru
      _
    // Predicated region
    $region14: #{tpu_custom_call.1} parent=1 // pred_check
      _
    $region15: #{tpu_custom_call.1} parent=1 // pred_check_branch
      %17 = sbr.rel (0) target = $region17
    $region16: #{tpu_custom_call.1} parent=1 // pred_region
      _
    $region17: #{tpu_custom_call.1} parent=1 // pred_fallthru
      _
    %v18 = vld [vmem:[%s0] sm:$0x1]
    %v19 = vmax.f32 %v18, 0.0
    %v20 = vpack.c.bf16 %v19, %v19
    %v21 = vld [vmem:[%s1] sm:$0xf]
    %v22 = vld [vmem:[%s1 + $0x4] sm:$0xf]
    %v23 = vld [vmem:[%s1 + $0x8] sm:$0xf]
    %v24 = vld [vmem:[%s1 + $0xc] sm:$0xf]
    %v25 = vld [vmem:[%s1 + $0x10] sm:$0xf]
    %v26 = vld [vmem:[%s1 + $0x14] sm:$0xf]
    %v27 = vld [vmem:[%s1 + $0x18] sm:$0xf]
    %v28 = vld [vmem:[%s1 + $0x1c] sm:$0xf]
    %v29 = vld [vmem:[%s1 + $0x20] sm:$0xf]
    %v30 = vld [vmem:[%s1 + $0x24] sm:$0xf]
    %v31 = vld [vmem:[%s1 + $0x28] sm:$0xf]
    %v32 = vld [vmem:[%s1 + $0x2c] sm:$0xf]
    %v33 = vld [vmem:[%s1 + $0x30] sm:$0xf]
    %v34 = vld [vmem:[%s1 + $0x34] sm:$0xf]
    %v35 = vld [vmem:[%s1 + $0x38] sm:$0xf]
    %v36 = vld [vmem:[%s1 + $0x3c] sm:$0xf]
    %v37 = vld [vmem:[%s1 + $0x40] sm:$0xf]
    %v38 = vld [vmem:[%s1 + $0x44] sm:$0xf]
    %v39 = vld [vmem:[%s1 + $0x48] sm:$0xf]
    %v40 = vld [vmem:[%s1 + $0x4c] sm:$0xf]
    %v41 = vld [vmem:[%s1 + $0x50] sm:$0xf]
    %v42 = vld [vmem:[%s1 + $0x54] sm:$0xf]
    %v43 = vld [vmem:[%s1 + $0x58] sm:$0xf]
    %v44 = vld [vmem:[%s1 + $0x5c] sm:$0xf]
    %v45 = vld [vmem:[%s1 + $0x60] sm:$0xf]
    %v46 = vld [vmem:[%s1 + $0x64] sm:$0xf]
    %v47 = vld [vmem:[%s1 + $0x68] sm:$0xf]
    %v48 = vld [vmem:[%s1 + $0x6c] sm:$0xf]
    %v49 = vld [vmem:[%s1 + $0x70] sm:$0xf]
    %v50 = vld [vmem:[%s1 + $0x74] sm:$0xf]
    %v51 = vld [vmem:[%s1 + $0x78] sm:$0xf]
    %v52 = vld [vmem:[%s1 + $0x7c] sm:$0xf]
    %v53 = vld [vmem:[%s1 + $0x80] sm:$0xf]
    %v54 = vld [vmem:[%s1 + $0x84] sm:$0xf]
    %v55 = vld [vmem:[%s1 + $0x88] sm:$0xf]
    %v56 = vld [vmem:[%s1 + $0x8c] sm:$0xf]
    %v57 = vunpack.c.l.bf16 %v21
    %v58 = vunpack.c.l.bf16 %v22
    %v59 = vunpack.c.l.bf16 %v23
    %v60 = vunpack.c.l.bf16 %v24
    %v61 = vunpack.c.l.bf16 %v25
    %v62 = vunpack.c.l.bf16 %v26
    %v63 = vunpack.c.l.bf16 %v27
    %v64 = vunpack.c.l.bf16 %v28
    %v65 = vunpack.c.l.bf16 %v29
    %v66 = vunpack.c.l.bf16 %v30
    %v67 = vunpack.c.l.bf16 %v31
    %v68 = vunpack.c.l.bf16 %v32
    %v69 = vunpack.c.l.bf16 %v33
    %v70 = vunpack.c.l.bf16 %v34
    %v71 = vunpack.c.l.bf16 %v35
    %v72 = vunpack.c.l.bf16 %v36
    %v73 = vunpack.c.l.bf16 %v37
    %v74 = vunpack.c.l.bf16 %v38
    %v75 = vunpack.c.l.bf16 %v39
    %v76 = vunpack.c.l.bf16 %v40
    %v77 = vunpack.c.l.bf16 %v41
    %v78 = vunpack.c.l.bf16 %v42
    %v79 = vunpack.c.l.bf16 %v43
    %v80 = vunpack.c.l.bf16 %v44
    %v81 = vunpack.c.l.bf16 %v45
    %v82 = vunpack.c.l.bf16 %v46
    %v83 = vunpack.c.l.bf16 %v47
    %v84 = vunpack.c.l.bf16 %v48
    %v85 = vunpack.c.l.bf16 %v49
    %v86 = vunpack.c.l.bf16 %v50
    %v87 = vunpack.c.l.bf16 %v51
    %v88 = vunpack.c.l.bf16 %v52
    %v89 = vunpack.c.l.bf16 %v53
    %v90 = vunpack.c.l.bf16 %v54
    %v91 = vunpack.c.l.bf16 %v55
    %v92 = vunpack.c.l.bf16 %v56
    %v93 = vunpack.c.l.bf16 %v20
    %v94 = vperm.slane %v93, 0
    %v95 = vmul.f32 %v57, %v94
    %v96 = vmul.f32 %v58, %v94
    %v97 = vmul.f32 %v59, %v94
    %v98 = vmul.f32 %v60, %v94
    %v99 = vmul.f32 %v61, %v94
    %v100 = vmul.f32 %v62, %v94
    %v101 = vmul.f32 %v63, %v94
    %v102 = vmul.f32 %v64, %v94
    %v103 = vmul.f32 %v65, %v94
    %v104 = vmul.f32 %v66, %v94
    %v105 = vmul.f32 %v67, %v94
    %v106 = vmul.f32 %v68, %v94
    %v107 = vmul.f32 %v69, %v94
    %v108 = vmul.f32 %v70, %v94
    %v109 = vmul.f32 %v71, %v94
    %v110 = vmul.f32 %v72, %v94
    %v111 = vmul.f32 %v73, %v94
    %v112 = vmul.f32 %v74, %v94
    %v113 = vmul.f32 %v75, %v94
    %v114 = vmul.f32 %v76, %v94
    %v115 = vmul.f32 %v77, %v94
    %v116 = vmul.f32 %v78, %v94
    %v117 = vmul.f32 %v79, %v94
    %v118 = vmul.f32 %v80, %v94
    %v119 = vmul.f32 %v81, %v94
    %v120 = vmul.f32 %v82, %v94
    %v121 = vmul.f32 %v83, %v94
    %v122 = vmul.f32 %v84, %v94
    %v123 = vmul.f32 %v85, %v94
    %v124 = vmul.f32 %v86, %v94
    %v125 = vmul.f32 %v87, %v94
    %v126 = vmul.f32 %v88, %v94
    %v127 = vmul.f32 %v89, %v94
    %v128 = vmul.f32 %v90, %v94
    %v129 = vmul.f32 %v91, %v94
    %v130 = vmul.f32 %v92, %v94
    %vm131 = vcmask 261120
    %v132 = vsel %vm131, %v95, 0.0
    %133 = vadd.xlane.f32.xlu0 %v132
    %v134 = vpop.xlane.xlu0 %133
    %v135 = vsel %vm131, %v96, 0.0
    %136 = vadd.xlane.f32.xlu0 %v135
    %v137 = vpop.xlane.xlu0 %136
    %v138 = vsel %vm131, %v97, 0.0
    %139 = vadd.xlane.f32.xlu0 %v138
    %v140 = vpop.xlane.xlu0 %139
    %v141 = vsel %vm131, %v98, 0.0
    %142 = vadd.xlane.f32.xlu0 %v141
    %v143 = vpop.xlane.xlu0 %142
    %v144 = vsel %vm131, %v99, 0.0
    %145 = vadd.xlane.f32.xlu0 %v144
    %v146 = vpop.xlane.xlu0 %145
    %v147 = vsel %vm131, %v100, 0.0
    %148 = vadd.xlane.f32.xlu0 %v147
    %v149 = vpop.xlane.xlu0 %148
    %v150 = vsel %vm131, %v101, 0.0
    %151 = vadd.xlane.f32.xlu0 %v150
    %v152 = vpop.xlane.xlu0 %151
    %v153 = vsel %vm131, %v102, 0.0
    %154 = vadd.xlane.f32.xlu0 %v153
    %v155 = vpop.xlane.xlu0 %154
    %v156 = vsel %vm131, %v103, 0.0
    %157 = vadd.xlane.f32.xlu0 %v156
    %v158 = vpop.xlane.xlu0 %157
    %v159 = vsel %vm131, %v104, 0.0
    %160 = vadd.xlane.f32.xlu0 %v159
    %v161 = vpop.xlane.xlu0 %160
    %v162 = vsel %vm131, %v105, 0.0
    %163 = vadd.xlane.f32.xlu0 %v162
    %v164 = vpop.xlane.xlu0 %163
    %v165 = vsel %vm131, %v106, 0.0
    %166 = vadd.xlane.f32.xlu0 %v165
    %v167 = vpop.xlane.xlu0 %166
    %v168 = vsel %vm131, %v107, 0.0
    %169 = vadd.xlane.f32.xlu0 %v168
    %v170 = vpop.xlane.xlu0 %169
    %v171 = vsel %vm131, %v108, 0.0
    %172 = vadd.xlane.f32.xlu0 %v171
    %v173 = vpop.xlane.xlu0 %172
    %v174 = vsel %vm131, %v109, 0.0
    %175 = vadd.xlane.f32.xlu0 %v174
    %v176 = vpop.xlane.xlu0 %175
    %v177 = vsel %vm131, %v110, 0.0
    %178 = vadd.xlane.f32.xlu0 %v177
    %v179 = vpop.xlane.xlu0 %178
    %v180 = vsel %vm131, %v111, 0.0
    %181 = vadd.xlane.f32.xlu0 %v180
    %v182 = vpop.xlane.xlu0 %181
    %v183 = vsel %vm131, %v112, 0.0
    %184 = vadd.xlane.f32.xlu0 %v183
    %v185 = vpop.xlane.xlu0 %184
    %v186 = vsel %vm131, %v113, 0.0
    %187 = vadd.xlane.f32.xlu0 %v186
    %v188 = vpop.xlane.xlu0 %187
    %v189 = vsel %vm131, %v114, 0.0
    %190 = vadd.xlane.f32.xlu0 %v189
    %v191 = vpop.xlane.xlu0 %190
    %v192 = vsel %vm131, %v115, 0.0
    %193 = vadd.xlane.f32.xlu0 %v192
    %v194 = vpop.xlane.xlu0 %193
    %v195 = vsel %vm131, %v116, 0.0
    %196 = vadd.xlane.f32.xlu0 %v195
    %v197 = vpop.xlane.xlu0 %196
    %v198 = vsel %vm131, %v117, 0.0
    %199 = vadd.xlane.f32.xlu0 %v198
    %v200 = vpop.xlane.xlu0 %199
    %v201 = vsel %vm131, %v118, 0.0
    %202 = vadd.xlane.f32.xlu0 %v201
    %v203 = vpop.xlane.xlu0 %202
    %v204 = vsel %vm131, %v119, 0.0
    %205 = vadd.xlane.f32.xlu0 %v204
    %v206 = vpop.xlane.xlu0 %205
    %v207 = vsel %vm131, %v120, 0.0
    %208 = vadd.xlane.f32.xlu0 %v207
    %v209 = vpop.xlane.xlu0 %208
    %v210 = vsel %vm131, %v121, 0.0
    %211 = vadd.xlane.f32.xlu0 %v210
    %v212 = vpop.xlane.xlu0 %211
    %v213 = vsel %vm131, %v122, 0.0
    %214 = vadd.xlane.f32.xlu0 %v213
    %v215 = vpop.xlane.xlu0 %214
    %v216 = vsel %vm131, %v123, 0.0
    %217 = vadd.xlane.f32.xlu0 %v216
    %v218 = vpop.xlane.xlu0 %217
    %v219 = vsel %vm131, %v124, 0.0
    %220 = vadd.xlane.f32.xlu0 %v219
    %v221 = vpop.xlane.xlu0 %220
    %v222 = vsel %vm131, %v125, 0.0
    %223 = vadd.xlane.f32.xlu0 %v222
    %v224 = vpop.xlane.xlu0 %223
    %v225 = vsel %vm131, %v126, 0.0
    %226 = vadd.xlane.f32.xlu0 %v225
    %v227 = vpop.xlane.xlu0 %226
    %v228 = vsel %vm131, %v127, 0.0
    %229 = vadd.xlane.f32.xlu0 %v228
    %v230 = vpop.xlane.xlu0 %229
    %v231 = vsel %vm131, %v128, 0.0
    %232 = vadd.xlane.f32.xlu0 %v231
    %v233 = vpop.xlane.xlu0 %232
    %v234 = vsel %vm131, %v129, 0.0
    %235 = vadd.xlane.f32.xlu0 %v234
    %v236 = vpop.xlane.xlu0 %235
    %v237 = vsel %vm131, %v130, 0.0
    %238 = vadd.xlane.f32.xlu0 %v237
    %v239 = vpop.xlane.xlu0 %238
    %v240 = vld [vmem:[%s2] sm:$0xff]
    %v241 = vld [vmem:[%s2 + $0x8] sm:$0xff]
    %v242 = vld [vmem:[%s2 + $0x10] sm:$0xff]
    %v243 = vld [vmem:[%s2 + $0x18] sm:$0xff]
    %v244 = vadd.f32 %v240, %v182
    %v245 = vadd.f32 %v241, %v185
    %v246 = vadd.f32 %v242, %v188
    %v247 = vadd.f32 %v243, %v191
    %249 = vset.pattern.permute.xlu0 0
    %250 = vperm.xlu0 %249, %v244
    %v251 = vpop.permute.xlu0 %250
    %254 = vset.pattern.permute.xlu0 0
    %255 = vperm.xlu0 %254, %v245
    %v256 = vpop.permute.xlu0 %255
    %259 = vset.pattern.permute.xlu0 0
    %260 = vperm.xlu0 %259, %v246
    %v261 = vpop.permute.xlu0 %260
    %264 = vset.pattern.permute.xlu0 0
    %265 = vperm.xlu0 %264, %v247
    %v266 = vpop.permute.xlu0 %265
    %v268 = vld [vmem:[%s3] ss:$8 sm:$0xf]
    %v270 = vperm.slane %v268, 0
    %v271 = vperm.slane %v268, 1
    %v272 = vperm.slane %v268, 2
    %v273 = vperm.slane %v268, 3
    %v278 = vmul.f32 %v134, %v270
    %v279 = vmul.f32 %v134, %v271
    %v280 = vmul.f32 %v134, %v272
    %v281 = vmul.f32 %v134, %v273
    %v282 = vmul.f32 %v137, %v270
    %v283 = vmul.f32 %v137, %v271
    %v284 = vmul.f32 %v137, %v272
    %v285 = vmul.f32 %v137, %v273
    %v286 = vmul.f32 %v140, %v270
    %v287 = vmul.f32 %v140, %v271
    %v288 = vmul.f32 %v140, %v272
    %v289 = vmul.f32 %v140, %v273
    %v290 = vmul.f32 %v143, %v270
    %v291 = vmul.f32 %v143, %v271
    %v292 = vmul.f32 %v143, %v272
    %v293 = vmul.f32 %v143, %v273
    %v294 = vadd.f32 %v251, %v278
    %v295 = vadd.f32 %v251, %v279
    %v296 = vadd.f32 %v251, %v280
    %v297 = vadd.f32 %v251, %v281
    %v298 = vadd.f32 %v256, %v282
    %v299 = vadd.f32 %v256, %v283
    %v300 = vadd.f32 %v256, %v284
    %v301 = vadd.f32 %v256, %v285
    %v302 = vadd.f32 %v261, %v286
    %v303 = vadd.f32 %v261, %v287
    %v304 = vadd.f32 %v261, %v288
    %v305 = vadd.f32 %v261, %v289
    %v306 = vadd.f32 %v266, %v290
    %v307 = vadd.f32 %v266, %v291
    %v308 = vadd.f32 %v266, %v292
    %v309 = vadd.f32 %v266, %v293
    %s310 = scalar_lea.vmem %s3, 1
    %v311 = vld [vmem:[%s310] ss:$8 sm:$0xf]
    %v313 = vperm.slane %v311, 0
    %v314 = vperm.slane %v311, 1
    %v315 = vperm.slane %v311, 2
    %v316 = vperm.slane %v311, 3
    %v321 = vmul.f32 %v146, %v313
    %v322 = vmul.f32 %v146, %v314
    %v323 = vmul.f32 %v146, %v315
    %v324 = vmul.f32 %v146, %v316
    %v325 = vmul.f32 %v149, %v313
    %v326 = vmul.f32 %v149, %v314
    %v327 = vmul.f32 %v149, %v315
    %v328 = vmul.f32 %v149, %v316
    %v329 = vmul.f32 %v152, %v313
    %v330 = vmul.f32 %v152, %v314
    %v331 = vmul.f32 %v152, %v315
    %v332 = vmul.f32 %v152, %v316
    %v333 = vmul.f32 %v155, %v313
    %v334 = vmul.f32 %v155, %v314
    %v335 = vmul.f32 %v155, %v315
    %v336 = vmul.f32 %v155, %v316
    %v337 = vadd.f32 %v294, %v321
    %v338 = vadd.f32 %v295, %v322
    %v339 = vadd.f32 %v296, %v323
    %v340 = vadd.f32 %v297, %v324
    %v341 = vadd.f32 %v298, %v325
    %v342 = vadd.f32 %v299, %v326
    %v343 = vadd.f32 %v300, %v327
    %v344 = vadd.f32 %v301, %v328
    %v345 = vadd.f32 %v302, %v329
    %v346 = vadd.f32 %v303, %v330
    %v347 = vadd.f32 %v304, %v331
    %v348 = vadd.f32 %v305, %v332
    %v349 = vadd.f32 %v306, %v333
    %v350 = vadd.f32 %v307, %v334
    %v351 = vadd.f32 %v308, %v335
    %v352 = vadd.f32 %v309, %v336
    %s353 = scalar_lea.vmem %s3, 2
    %v354 = vld [vmem:[%s353] ss:$8 sm:$0xf]
    %v356 = vperm.slane %v354, 0
    %v357 = vperm.slane %v354, 1
    %v358 = vperm.slane %v354, 2
    %v359 = vperm.slane %v354, 3
    %v364 = vmul.f32 %v158, %v356
    %v365 = vmul.f32 %v158, %v357
    %v366 = vmul.f32 %v158, %v358
    %v367 = vmul.f32 %v158, %v359
    %v368 = vmul.f32 %v161, %v356
    %v369 = vmul.f32 %v161, %v357
    %v370 = vmul.f32 %v161, %v358
    %v371 = vmul.f32 %v161, %v359
    %v372 = vmul.f32 %v164, %v356
    %v373 = vmul.f32 %v164, %v357
    %v374 = vmul.f32 %v164, %v358
    %v375 = vmul.f32 %v164, %v359
    %v376 = vmul.f32 %v167, %v356
    %v377 = vmul.f32 %v167, %v357
    %v378 = vmul.f32 %v167, %v358
    %v379 = vmul.f32 %v167, %v359
    %v380 = vadd.f32 %v337, %v364
    %v381 = vadd.f32 %v338, %v365
    %v382 = vadd.f32 %v339, %v366
    %v383 = vadd.f32 %v340, %v367
    %v384 = vadd.f32 %v341, %v368
    %v385 = vadd.f32 %v342, %v369
    %v386 = vadd.f32 %v343, %v370
    %v387 = vadd.f32 %v344, %v371
    %v388 = vadd.f32 %v345, %v372
    %v389 = vadd.f32 %v346, %v373
    %v390 = vadd.f32 %v347, %v374
    %v391 = vadd.f32 %v348, %v375
    %v392 = vadd.f32 %v349, %v376
    %v393 = vadd.f32 %v350, %v377
    %v394 = vadd.f32 %v351, %v378
    %v395 = vadd.f32 %v352, %v379
    %s396 = scalar_lea.vmem %s3, 3
    %v397 = vld [vmem:[%s396] ss:$8 sm:$0xf]
    %v399 = vperm.slane %v397, 0
    %v400 = vperm.slane %v397, 1
    %v401 = vperm.slane %v397, 2
    %v402 = vperm.slane %v397, 3
    %v407 = vmul.f32 %v170, %v399
    %v408 = vmul.f32 %v170, %v400
    %v409 = vmul.f32 %v170, %v401
    %v410 = vmul.f32 %v170, %v402
    %v411 = vmul.f32 %v173, %v399
    %v412 = vmul.f32 %v173, %v400
    %v413 = vmul.f32 %v173, %v401
    %v414 = vmul.f32 %v173, %v402
    %v415 = vmul.f32 %v176, %v399
    %v416 = vmul.f32 %v176, %v400
    %v417 = vmul.f32 %v176, %v401
    %v418 = vmul.f32 %v176, %v402
    %v419 = vmul.f32 %v179, %v399
    %v420 = vmul.f32 %v179, %v400
    %v421 = vmul.f32 %v179, %v401
    %v422 = vmul.f32 %v179, %v402
    %v423 = vadd.f32 %v380, %v407
    %v424 = vadd.f32 %v381, %v408
    %v425 = vadd.f32 %v382, %v409
    %v426 = vadd.f32 %v383, %v410
    %v427 = vadd.f32 %v384, %v411
    %v428 = vadd.f32 %v385, %v412
    %v429 = vadd.f32 %v386, %v413
    %v430 = vadd.f32 %v387, %v414
    %v431 = vadd.f32 %v388, %v415
    %v432 = vadd.f32 %v389, %v416
    %v433 = vadd.f32 %v390, %v417
    %v434 = vadd.f32 %v391, %v418
    %v435 = vadd.f32 %v392, %v419
    %v436 = vadd.f32 %v393, %v420
    %v437 = vadd.f32 %v394, %v421
    %v438 = vadd.f32 %v395, %v422
    %s439 = scalar_lea.vmem %s3, 5
    %v440 = vld [vmem:[%s439] ss:$8 sm:$0xf]
    %v442 = vperm.slane %v440, 0
    %v443 = vperm.slane %v440, 1
    %v444 = vperm.slane %v440, 2
    %v445 = vperm.slane %v440, 3
    %v450 = vmul.f32 %v194, %v442
    %v451 = vmul.f32 %v194, %v443
    %v452 = vmul.f32 %v194, %v444
    %v453 = vmul.f32 %v194, %v445
    %v454 = vmul.f32 %v197, %v442
    %v455 = vmul.f32 %v197, %v443
    %v456 = vmul.f32 %v197, %v444
    %v457 = vmul.f32 %v197, %v445
    %v458 = vmul.f32 %v200, %v442
    %v459 = vmul.f32 %v200, %v443
    %v460 = vmul.f32 %v200, %v444
    %v461 = vmul.f32 %v200, %v445
    %v462 = vmul.f32 %v203, %v442
    %v463 = vmul.f32 %v203, %v443
    %v464 = vmul.f32 %v203, %v444
    %v465 = vmul.f32 %v203, %v445
    %v466 = vadd.f32 %v423, %v450
    %v467 = vadd.f32 %v424, %v451
    %v468 = vadd.f32 %v425, %v452
    %v469 = vadd.f32 %v426, %v453
    %v470 = vadd.f32 %v427, %v454
    %v471 = vadd.f32 %v428, %v455
    %v472 = vadd.f32 %v429, %v456
    %v473 = vadd.f32 %v430, %v457
    %v474 = vadd.f32 %v431, %v458
    %v475 = vadd.f32 %v432, %v459
    %v476 = vadd.f32 %v433, %v460
    %v477 = vadd.f32 %v434, %v461
    %v478 = vadd.f32 %v435, %v462
    %v479 = vadd.f32 %v436, %v463
    %v480 = vadd.f32 %v437, %v464
    %v481 = vadd.f32 %v438, %v465
    %s482 = scalar_lea.vmem %s3, 6
    %v483 = vld [vmem:[%s482] ss:$8 sm:$0xf]
    %v485 = vperm.slane %v483, 0
    %v486 = vperm.slane %v483, 1
    %v487 = vperm.slane %v483, 2
    %v488 = vperm.slane %v483, 3
    %v493 = vmul.f32 %v206, %v485
    %v494 = vmul.f32 %v206, %v486
    %v495 = vmul.f32 %v206, %v487
    %v496 = vmul.f32 %v206, %v488
    %v497 = vmul.f32 %v209, %v485
    %v498 = vmul.f32 %v209, %v486
    %v499 = vmul.f32 %v209, %v487
    %v500 = vmul.f32 %v209, %v488
    %v501 = vmul.f32 %v212, %v485
    %v502 = vmul.f32 %v212, %v486
    %v503 = vmul.f32 %v212, %v487
    %v504 = vmul.f32 %v212, %v488
    %v505 = vmul.f32 %v215, %v485
    %v506 = vmul.f32 %v215, %v486
    %v507 = vmul.f32 %v215, %v487
    %v508 = vmul.f32 %v215, %v488
    %v509 = vadd.f32 %v466, %v493
    %v510 = vadd.f32 %v467, %v494
    %v511 = vadd.f32 %v468, %v495
    %v512 = vadd.f32 %v469, %v496
    %v513 = vadd.f32 %v470, %v497
    %v514 = vadd.f32 %v471, %v498
    %v515 = vadd.f32 %v472, %v499
    %v516 = vadd.f32 %v473, %v500
    %v517 = vadd.f32 %v474, %v501
    %v518 = vadd.f32 %v475, %v502
    %v519 = vadd.f32 %v476, %v503
    %v520 = vadd.f32 %v477, %v504
    %v521 = vadd.f32 %v478, %v505
    %v522 = vadd.f32 %v479, %v506
    %v523 = vadd.f32 %v480, %v507
    %v524 = vadd.f32 %v481, %v508
    %s525 = scalar_lea.vmem %s3, 7
    %v526 = vld [vmem:[%s525] ss:$8 sm:$0xf]
    %v528 = vperm.slane %v526, 0
    %v529 = vperm.slane %v526, 1
    %v530 = vperm.slane %v526, 2
    %v531 = vperm.slane %v526, 3
    %v536 = vmul.f32 %v218, %v528
    %v537 = vmul.f32 %v218, %v529
    %v538 = vmul.f32 %v218, %v530
    %v539 = vmul.f32 %v218, %v531
    %v540 = vmul.f32 %v221, %v528
    %v541 = vmul.f32 %v221, %v529
    %v542 = vmul.f32 %v221, %v530
    %v543 = vmul.f32 %v221, %v531
    %v544 = vmul.f32 %v224, %v528
    %v545 = vmul.f32 %v224, %v529
    %v546 = vmul.f32 %v224, %v530
    %v547 = vmul.f32 %v224, %v531
    %v548 = vmul.f32 %v227, %v528
    %v549 = vmul.f32 %v227, %v529
    %v550 = vmul.f32 %v227, %v530
    %v551 = vmul.f32 %v227, %v531
    %v552 = vadd.f32 %v509, %v536
    %v553 = vadd.f32 %v510, %v537
    %v554 = vadd.f32 %v511, %v538
    %v555 = vadd.f32 %v512, %v539
    %v556 = vadd.f32 %v513, %v540
    %v557 = vadd.f32 %v514, %v541
    %v558 = vadd.f32 %v515, %v542
    %v559 = vadd.f32 %v516, %v543
    %v560 = vadd.f32 %v517, %v544
    %v561 = vadd.f32 %v518, %v545
    %v562 = vadd.f32 %v519, %v546
    %v563 = vadd.f32 %v520, %v547
    %v564 = vadd.f32 %v521, %v548
    %v565 = vadd.f32 %v522, %v549
    %v566 = vadd.f32 %v523, %v550
    %v567 = vadd.f32 %v524, %v551
    %s568 = scalar_lea.vmem %s3, 32
    %v569 = vld [vmem:[%s568] ss:$8 sm:$0xf]
    %v571 = vperm.slane %v569, 0
    %v572 = vperm.slane %v569, 1
    %v573 = vperm.slane %v569, 2
    %v574 = vperm.slane %v569, 3
    %v579 = vmul.f32 %v230, %v571
    %v580 = vmul.f32 %v230, %v572
    %v581 = vmul.f32 %v230, %v573
    %v582 = vmul.f32 %v230, %v574
    %v583 = vmul.f32 %v233, %v571
    %v584 = vmul.f32 %v233, %v572
    %v585 = vmul.f32 %v233, %v573
    %v586 = vmul.f32 %v233, %v574
    %v587 = vmul.f32 %v236, %v571
    %v588 = vmul.f32 %v236, %v572
    %v589 = vmul.f32 %v236, %v573
    %v590 = vmul.f32 %v236, %v574
    %v591 = vmul.f32 %v239, %v571
    %v592 = vmul.f32 %v239, %v572
    %v593 = vmul.f32 %v239, %v573
    %v594 = vmul.f32 %v239, %v574
    %v595 = vadd.f32 %v552, %v579
    %v596 = vadd.f32 %v553, %v580
    %v597 = vadd.f32 %v554, %v581
    %v598 = vadd.f32 %v555, %v582
    %v599 = vadd.f32 %v556, %v583
    %v600 = vadd.f32 %v557, %v584
    %v601 = vadd.f32 %v558, %v585
    %v602 = vadd.f32 %v559, %v586
    %v603 = vadd.f32 %v560, %v587
    %v604 = vadd.f32 %v561, %v588
    %v605 = vadd.f32 %v562, %v589
    %v606 = vadd.f32 %v563, %v590
    %v607 = vadd.f32 %v564, %v591
    %v608 = vadd.f32 %v565, %v592
    %v609 = vadd.f32 %v566, %v593
    %v610 = vadd.f32 %v567, %v594
    %611 = vst [vmem:[#allocation2] sm:$0xff] %v595
    %612 = vst [vmem:[#allocation2 + $0x8] sm:$0xff] %v596
    %613 = vst [vmem:[#allocation2 + $0x10] sm:$0xff] %v597
    %614 = vst [vmem:[#allocation2 + $0x18] sm:$0xff] %v598
    %615 = vst [vmem:[#allocation2 + $0x20] sm:$0xff] %v599
    %616 = vst [vmem:[#allocation2 + $0x28] sm:$0xff] %v600
    %617 = vst [vmem:[#allocation2 + $0x30] sm:$0xff] %v601
    %618 = vst [vmem:[#allocation2 + $0x38] sm:$0xff] %v602
    %619 = vst [vmem:[#allocation2 + $0x40] sm:$0xff] %v603
    %620 = vst [vmem:[#allocation2 + $0x48] sm:$0xff] %v604
    %621 = vst [vmem:[#allocation2 + $0x50] sm:$0xff] %v605
    %622 = vst [vmem:[#allocation2 + $0x58] sm:$0xff] %v606
    %623 = vst [vmem:[#allocation2 + $0x60] sm:$0xff] %v607
    %624 = vst [vmem:[#allocation2 + $0x68] sm:$0xff] %v608
    %625 = vst [vmem:[#allocation2 + $0x70] sm:$0xff] %v609
    %626 = vst [vmem:[#allocation2 + $0x78] sm:$0xff] %v610
    // Predicated region
    $region18: #{tpu_custom_call.1} parent=1 // pred_check
      _
    $region19: #{tpu_custom_call.1} parent=1 // pred_check_branch
      %628 = sbr.rel (0) target = $region21
    $region20: #{tpu_custom_call.1} parent=1 // pred_region
      %630 = vsyncadd [#allocation3], 0
      %s631 = sshll.u32 [#allocation2], 4
      %s632 = int_to_ptr.vmem [resolvable:$true] %s631
      %s633 = sshll.u32 %s4, 4
      %s634 = int_to_ptr.hbm [resolvable:$true] %s633
      %639 = dma.vmem_to_hbm [thread:$0]  %s632, 2048, %s634, [#allocation3], 512, 512, 32
    $region21: #{tpu_custom_call.1} parent=1 // pred_fallthru
      _
    // Predicated region
    $region22: #{tpu_custom_call.1} parent=1 // pred_check
      _
    $region23: #{tpu_custom_call.1} parent=1 // pred_check_branch
      %641 = sbr.rel (0) target = $region25
    $region24: #{tpu_custom_call.1} parent=1 // pred_region
      %643 = dma.done [#allocation3], 2048
    $region25: #{tpu_custom_call.1} parent=1 // pred_fallthru
      _
    %644 = vsyncpa [#allocation3], 1

</llo_original>
